<compile_context>
chip_gen: v5e
topology: v5e:2x2
jax: 0.10.0
libtpu: 0.0.40
codegen_flags: <defaults>
</compile_context>

<pallas_src>
import math

import jax
import jax.numpy as jnp
from jax.experimental import pallas as pl
from jax.experimental.pallas import tpu as pltpu


def _wsage_kernel(a_ref, hk_ref, hi_ref, deginv_ref, w1_ref, w2_ref, b_ref,
                  o_ref, acc_ref):
    k = pl.program_id(1)

    # Zero the accumulator on the first contraction step of each row tile.
    @pl.when(k == 0)
    def _():
        acc_ref[...] = jnp.zeros_like(acc_ref)

    # Weighted message aggregation: acc[v, :] += sum_u A[v, u] * h[u, :]   (MXU, bf16 -> f32)
    acc_ref[...] += jnp.dot(a_ref[...], hk_ref[...],
                            preferred_element_type=jnp.float32)

    # Finalize on the last contraction step: mean + split linear + bias.
    @pl.when(k == pl.num_programs(1) - 1)
    def _():
        h_n = (acc_ref[...] * deginv_ref[...]).astype(w2_ref.dtype)
        out = (
            jnp.dot(hi_ref[...], w1_ref[...], preferred_element_type=jnp.float32)
            + jnp.dot(h_n, w2_ref[...], preferred_element_type=jnp.float32)
            + b_ref[...]
        )
        o_ref[...] = out.astype(o_ref.dtype)


def weighted_sage_conv(adj_w, h, deg, weight, bias, *, tm=128, tk=256):
    """adj_w: (N, N) weighted adjacency (adj_w[v, u] = weight of edge u->v, else 0)
       h:     (N, F) node features
       deg:   (N,)   in-degree counts (number of incoming edges per destination)
       weight:(O, 2F) nn.Linear weight, bias: (O,)
       returns (N, O) float32
    """
    N, F = h.shape
    O = weight.shape[0]
    LANE = 128
    f32, bf16 = jnp.float32, jnp.bfloat16

    # Pad feature/output dims to the 128-lane width; pad N to a tile multiple. (glue)
    Fp = pl.cdiv(F, LANE) * LANE
    Op = pl.cdiv(O, LANE) * LANE
    blk = math.lcm(tm, tk)
    Np = pl.cdiv(N, blk) * blk

    a_p = jnp.zeros((Np, Np), bf16).at[:N, :N].set(adj_w.astype(bf16))
    h_p = jnp.zeros((Np, Fp), bf16).at[:N, :F].set(h.astype(bf16))

    deg_inv = jnp.where(deg > 0, 1.0 / jnp.maximum(deg, 1.0), 0.0).astype(f32)
    deg_p = jnp.zeros((Np, 1), f32).at[:N, 0].set(deg_inv)

    # Split + transpose the linear weight: concat([h, h_N]) @ W.T == h @ W1 + h_N @ W2.
    w1 = jnp.zeros((Fp, Op), bf16).at[:F, :O].set(weight[:, :F].T.astype(bf16))
    w2 = jnp.zeros((Fp, Op), bf16).at[:F, :O].set(weight[:, F:].T.astype(bf16))
    b = jnp.zeros((1, Op), f32).at[0, :O].set(bias.astype(f32))

    grid = (Np // tm, Np // tk)

    out_p = pl.pallas_call(
        _wsage_kernel,
        out_shape=jax.ShapeDtypeStruct((Np, Op), f32),
        grid_spec=pltpu.PrefetchScalarGridSpec(
            num_scalar_prefetch=0,
            grid=grid,
            in_specs=[
                pl.BlockSpec((tm, tk), lambda i, k: (i, k)),   # A tile (dominant traffic)
                pl.BlockSpec((tk, Fp), lambda i, k: (k, 0)),   # h rows of sources (aggregation)
                pl.BlockSpec((tm, Fp), lambda i, k: (i, 0)),   # h rows of destinations (self term)
                pl.BlockSpec((tm, 1), lambda i, k: (i, 0)),    # 1/deg per destination
                pl.BlockSpec((Fp, Op), lambda i, k: (0, 0)),   # W1 (resident)
                pl.BlockSpec((Fp, Op), lambda i, k: (0, 0)),   # W2 (resident)
                pl.BlockSpec((1, Op), lambda i, k: (0, 0)),    # bias (resident)
            ],
            out_specs=pl.BlockSpec((tm, Op), lambda i, k: (i, 0)),
            scratch_shapes=[pltpu.VMEM((tm, Fp), f32)],        # A@h accumulator
        ),
        compiler_params=pltpu.CompilerParams(
            dimension_semantics=("parallel", "arbitrary"),
            vmem_limit_bytes=32 * 1024 * 1024,
        ),
    )(a_p, h_p, h_p, deg_p, w1, w2, b)

    return out_p[:N, :O]


def _reference(adj_w, h, deg, weight, bias):
    deg_inv = jnp.where(deg > 0, 1.0 / jnp.maximum(deg, 1.0), 0.0)[:, None]
    h_n = (adj_w @ h) * deg_inv
    h_total = jnp.concatenate([h, h_n], axis=1)
    return h_total @ weight.T + bias


if __name__ == "__main__":
    key = jax.random.PRNGKey(0)
    k_feat, k_mask, k_w, k_lin, k_b = jax.random.split(key, 5)

    N = 512          # number of nodes
    IN_FEAT = 32     # input feature size
    OUT_FEAT = 32    # output feature size

    # Node features.
    h = jax.random.normal(k_feat, (N, IN_FEAT), dtype=jnp.float32)

    # Random sparse directed graph with edge weights, stored densely.
    mask = (jax.random.uniform(k_mask, (N, N)) < 0.1).astype(jnp.float32)
    edge_w = jax.random.uniform(k_w, (N, N), dtype=jnp.float32)
    adj_w = mask * edge_w                # adj_w[v, u] = weight of edge u -> v
    deg = jnp.sum(mask, axis=1)          # in-degree (edge count per destination)

    # Deterministic nn.Linear(2*IN_FEAT, OUT_FEAT) params.
    bound = 1.0 / jnp.sqrt(2.0 * IN_FEAT)
    weight = jax.random.uniform(k_lin, (OUT_FEAT, 2 * IN_FEAT),
                                minval=-bound, maxval=bound, dtype=jnp.float32)
    bias = jax.random.uniform(k_b, (OUT_FEAT,),
                              minval=-bound, maxval=bound, dtype=jnp.float32)

    out = weighted_sage_conv(adj_w, h, deg, weight, bias)
    out = jax.block_until_ready(out)

    ref = _reference(adj_w, h, deg, weight, bias)
    assert out.shape == (N, OUT_FEAT)
    max_err = float(jnp.max(jnp.abs(out - ref)))
    # bf16 MXU inputs (f32 accumulation) -> loosened tolerance vs. the f32 reference.
    assert jnp.allclose(out, ref, atol=5e-2, rtol=5e-2), (
        f"mismatch vs reference (max abs err {max_err})")

    print("KERNEL_OK")
</pallas_src>

<mosaic_0001>
module attributes {stable_mosaic.version = 11 : i64} {
  func.func @_wsage_kernel(%arg0: i32, %arg1: i32, %arg2: memref<128x256xbf16, #tpu.memory_space<vmem>>, %arg3: memref<256x128xbf16, #tpu.memory_space<vmem>>, %arg4: memref<128x128xbf16, #tpu.memory_space<vmem>>, %arg5: memref<128x1xf32, #tpu.memory_space<vmem>>, %arg6: memref<128x128xbf16, #tpu.memory_space<vmem>>, %arg7: memref<128x128xbf16, #tpu.memory_space<vmem>>, %arg8: memref<1x128xf32, #tpu.memory_space<vmem>>, %arg9: memref<128x128xf32, #tpu.memory_space<vmem>>, %arg10: memref<128x128xf32, #tpu.memory_space<vmem>>) attributes {dimension_semantics = [#tpu.dimension_semantics<parallel>, #tpu.dimension_semantics<arbitrary>], iteration_bounds = array<i64: 4, 2>, scalar_prefetch = 0 : i64, scratch_operands = 1 : i64, tpu.core_type = #tpu.core_type<tc>, window_params = [{transform_indices = @transform_0, window_bounds = array<i64: 128, 256>}, {transform_indices = @transform_1, window_bounds = array<i64: 256, 128>}, {transform_indices = @transform_2, window_bounds = array<i64: 128, 128>}, {transform_indices = @transform_3, window_bounds = array<i64: 128, 1>}, {pipeline_mode = #tpu.pipeline_mode<synchronous>, transform_indices = @transform_4, window_bounds = array<i64: 128, 128>}, {pipeline_mode = #tpu.pipeline_mode<synchronous>, transform_indices = @transform_5, window_bounds = array<i64: 128, 128>}, {pipeline_mode = #tpu.pipeline_mode<synchronous>, transform_indices = @transform_6, window_bounds = array<i64: 1, 128>}, {transform_indices = @transform_7, window_bounds = array<i64: 128, 128>}]} {
    %c0_i32 = arith.constant 0 : i32
    %0 = arith.cmpi eq, %arg1, %c0_i32 : i32
    %1 = arith.extui %0 : i1 to i32
    %c0_i32_0 = arith.constant 0 : i32
    %2 = arith.cmpi ne, %1, %c0_i32_0 : i32
    scf.if %2 {
      %cst_9 = arith.constant 0.000000e+00 : f32
      %12 = vector.broadcast %cst_9 : f32 to vector<128x128xf32>
      %c0_10 = arith.constant 0 : index
      %c0_11 = arith.constant 0 : index
      %13 = vector.load %arg10[%c0_10, %c0_11] : memref<128x128xf32, #tpu.memory_space<vmem>>, vector<128x128xf32>
      tpu.vector_store %arg10[%c0_10, %c0_11], %12 {strides = array<i32>} : memref<128x128xf32, #tpu.memory_space<vmem>>, vector<128x128xf32>,
    } else {
    }
    %c0 = arith.constant 0 : index
    %c0_1 = arith.constant 0 : index
    %3 = vector.load %arg10[%c0, %c0_1] : memref<128x128xf32, #tpu.memory_space<vmem>>, vector<128x128xf32>
    %c0_2 = arith.constant 0 : index
    %c0_3 = arith.constant 0 : index
    %4 = vector.load %arg2[%c0_2, %c0_3] : memref<128x256xbf16, #tpu.memory_space<vmem>>, vector<128x256xbf16>
    %c0_4 = arith.constant 0 : index
    %c0_5 = arith.constant 0 : index
    %5 = vector.load %arg3[%c0_4, %c0_5] : memref<256x128xbf16, #tpu.memory_space<vmem>>, vector<256x128xbf16>
    %cst = arith.constant dense<0.000000e+00> : vector<128x128xf32>
    %6 = tpu.matmul %4, %5, %cst {dimension_numbers = #tpu.dot_dimension_numbers<[1], [0], [0], [1], [0, 0, 1, 1], [], []>} : vector<128x256xbf16>, vector<256x128xbf16>, vector<128x128xf32> -> vector<128x128xf32>
    %7 = arith.addf %3, %6 : vector<128x128xf32>
    %c0_6 = arith.constant 0 : index
    %c0_7 = arith.constant 0 : index
    %8 = vector.load %arg10[%c0_6, %c0_7] : memref<128x128xf32, #tpu.memory_space<vmem>>, vector<128x128xf32>
    tpu.vector_store %arg10[%c0_6, %c0_7], %7 {strides = array<i32>} : memref<128x128xf32, #tpu.memory_space<vmem>>, vector<128x128xf32>,
    %c1_i32 = arith.constant 1 : i32
    %9 = arith.cmpi eq, %arg1, %c1_i32 : i32
    %10 = arith.extui %9 : i1 to i32
    %c0_i32_8 = arith.constant 0 : i32
    %11 = arith.cmpi ne, %10, %c0_i32_8 : i32
    scf.if %11 {
      %c0_9 = arith.constant 0 : index
      %c0_10 = arith.constant 0 : index
      %12 = vector.load %arg10[%c0_9, %c0_10] : memref<128x128xf32, #tpu.memory_space<vmem>>, vector<128x128xf32>
      %c0_11 = arith.constant 0 : index
      %c0_12 = arith.constant 0 : index
      %13 = vector.load %arg5[%c0_11, %c0_12] : memref<128x1xf32, #tpu.memory_space<vmem>>, vector<128x1xf32>
      %14 = vector.broadcast %13 : vector<128x1xf32> to vector<128x128xf32>
      %15 = arith.mulf %12, %14 : vector<128x128xf32>
      %16 = arith.truncf %15 : vector<128x128xf32> to vector<128x128xbf16>
      %c0_13 = arith.constant 0 : index
      %c0_14 = arith.constant 0 : index
      %17 = vector.load %arg4[%c0_13, %c0_14] : memref<128x128xbf16, #tpu.memory_space<vmem>>, vector<128x128xbf16>
      %c0_15 = arith.constant 0 : index
      %c0_16 = arith.constant 0 : index
      %18 = vector.load %arg6[%c0_15, %c0_16] : memref<128x128xbf16, #tpu.memory_space<vmem>>, vector<128x128xbf16>
      %cst_17 = arith.constant dense<0.000000e+00> : vector<128x128xf32>
      %19 = tpu.matmul %17, %18, %cst_17 {dimension_numbers = #tpu.dot_dimension_numbers<[1], [0], [0], [1], [0, 0, 1, 1], [], []>} : vector<128x128xbf16>, vector<128x128xbf16>, vector<128x128xf32> -> vector<128x128xf32>
      %c0_18 = arith.constant 0 : index
      %c0_19 = arith.constant 0 : index
      %20 = vector.load %arg7[%c0_18, %c0_19] : memref<128x128xbf16, #tpu.memory_space<vmem>>, vector<128x128xbf16>
      %cst_20 = arith.constant dense<0.000000e+00> : vector<128x128xf32>
      %21 = tpu.matmul %16, %20, %cst_20 {dimension_numbers = #tpu.dot_dimension_numbers<[1], [0], [0], [1], [0, 0, 1, 1], [], []>} : vector<128x128xbf16>, vector<128x128xbf16>, vector<128x128xf32> -> vector<128x128xf32>
      %22 = arith.addf %19, %21 : vector<128x128xf32>
      %c0_21 = arith.constant 0 : index
      %c0_22 = arith.constant 0 : index
      %23 = vector.load %arg8[%c0_21, %c0_22] : memref<1x128xf32, #tpu.memory_space<vmem>>, vector<1x128xf32>
      %24 = vector.broadcast %23 : vector<1x128xf32> to vector<128x128xf32>
      %25 = arith.addf %22, %24 : vector<128x128xf32>
      %c0_23 = arith.constant 0 : index
      %c0_24 = arith.constant 0 : index
      %26 = vector.load %arg9[%c0_23, %c0_24] : memref<128x128xf32, #tpu.memory_space<vmem>>, vector<128x128xf32>
      tpu.vector_store %arg9[%c0_23, %c0_24], %25 {strides = array<i32>} : memref<128x128xf32, #tpu.memory_space<vmem>>, vector<128x128xf32>,
    } else {
    }
    return
  }
  func.func @transform_0(%arg0: i32, %arg1: i32) -> (i32, i32) {
    %c0_i32 = arith.constant 0 : i32
    return %arg0, %arg1 : i32, i32
  }
  func.func @transform_1(%arg0: i32, %arg1: i32) -> (i32, i32) {
    %c0_i32 = arith.constant 0 : i32
    %c0_i32_0 = arith.constant 0 : i32
    return %arg1, %c0_i32 : i32, i32
  }
  func.func @transform_2(%arg0: i32, %arg1: i32) -> (i32, i32) {
    %c0_i32 = arith.constant 0 : i32
    %c0_i32_0 = arith.constant 0 : i32
    return %arg0, %c0_i32 : i32, i32
  }
  func.func @transform_3(%arg0: i32, %arg1: i32) -> (i32, i32) {
    %c0_i32 = arith.constant 0 : i32
    %c0_i32_0 = arith.constant 0 : i32
    return %arg0, %c0_i32 : i32, i32
  }
  func.func @transform_4(%arg0: i32, %arg1: i32) -> (i32, i32) {
    %c0_i32 = arith.constant 0 : i32
    %c0_i32_0 = arith.constant 0 : i32
    %c0_i32_1 = arith.constant 0 : i32
    return %c0_i32, %c0_i32_0 : i32, i32
  }
  func.func @transform_5(%arg0: i32, %arg1: i32) -> (i32, i32) {
    %c0_i32 = arith.constant 0 : i32
    %c0_i32_0 = arith.constant 0 : i32
    %c0_i32_1 = arith.constant 0 : i32
    return %c0_i32, %c0_i32_0 : i32, i32
  }
  func.func @transform_6(%arg0: i32, %arg1: i32) -> (i32, i32) {
    %c0_i32 = arith.constant 0 : i32
    %c0_i32_0 = arith.constant 0 : i32
    %c0_i32_1 = arith.constant 0 : i32
    return %c0_i32, %c0_i32_0 : i32, i32
  }
  func.func @transform_7(%arg0: i32, %arg1: i32) -> (i32, i32) {
    %c0_i32 = arith.constant 0 : i32
    %c0_i32_0 = arith.constant 0 : i32
    return %arg0, %c0_i32 : i32, i32
  }
}

</mosaic_0001>

<llo_original>
// kernel: tpu_custom_call.1
$region0: #{tpu_custom_call.1}
  #allocation0 [shape = 'u32[]', space=smem, size = 0x4, offset = 0x4, fixed_abs, tag = 'smem constant byte address 0x4 - core index']
  #allocation1 [shape = 'u32[72,128]{1,0:T(1,128)}', space=vmem, size = 0x9000, scoped, tag = 'internal scratch']
  #allocation2 [shape = 'f32[128,128]{1,0:T(8,128)}', space=vmem, size = 0x10000, scoped, tag = 'scratch operand']
  %s0 = inlined_call_operand.hbm [shape: bf16[512,512], index: 0, kind: input, shape index: {}]
  %s1 = inlined_call_operand.vmem [shape: bf16[512,128], index: 1, kind: input, shape index: {}]
  %s2 = inlined_call_operand.vmem [shape: bf16[512,128], index: 2, kind: input, shape index: {}]
  %s3 = inlined_call_operand.vmem [shape: f32[512,1], index: 3, kind: input, shape index: {}]
  %s4 = inlined_call_operand.hbm [shape: bf16[128,128], index: 4, kind: input, shape index: {}]
  %s5 = inlined_call_operand.hbm [shape: bf16[128,128], index: 5, kind: input, shape index: {}]
  %s6 = inlined_call_operand.vmem [shape: f32[1,128], index: 6, kind: input, shape index: {}]
  %s7 = inlined_call_operand.hbm [shape: f32[512,128], index: 7, kind: output, shape index: {}]
  %s8 = sld [smem:[#allocation0]]
  $region81: #{tpu_custom_call.1} parent=0
    _
  %s10 = ssub.s32 1, %s8
  %s11 = scalar_select 0, %s10, %s8
  $region1: #{tpu_custom_call.1} parent=0
    #allocation3 [shape = 'u8[131072]{0}', space=vmem, size = 0x20000, scoped, tag = 'input window, operand 0']
    #allocation4 [shape = 's32[2]{0}', space=sflag, size = 0x8, scoped, tag = 'scoped memory for tpu_custom_call.1']
    #allocation5 [shape = 's32[2]{0}', space=sflag, size = 0x8, scoped, tag = 'scoped memory for tpu_custom_call.1']
    #allocation6 [shape = 'u8[32768]{0}', space=vmem, size = 0x8000, scoped, tag = 'input window, operand 4, single buffered']
    #allocation7 [shape = 's32[1]{0}', space=sflag, size = 0x4, scoped, tag = 'scoped memory for tpu_custom_call.1']
    #allocation8 [shape = 'u8[32768]{0}', space=vmem, size = 0x8000, scoped, tag = 'input window, operand 5, single buffered']
    #allocation9 [shape = 'u8[131072]{0}', space=vmem, size = 0x20000, scoped, tag = 'output window, operand 0']
    %12 = vsyncpa [#allocation4], 0
    %s13 = scalar_lea.sflag [#allocation4], 1
    %14 = vsyncpa %s13, 0
    %15 = vsyncpa [#allocation7], 0
    %16 = vsyncpa [#allocation5], 0
    %s17 = scalar_lea.sflag [#allocation5], 1
    %18 = vsyncpa %s17, 0
    loop: start=0, step=1, limit=10
    $region2: #{tpu_custom_call.1} parent=1 // loop_pre_header
      _
    $region3: #{tpu_custom_call.1} parent=1 // loop_header
      %s20 = sphi 0, %s24
      %p21 = scmp.ge.s32.totalorder %s20, 10
      %s27 = sphi 0, %s39
      %s28 = sphi 0, %s35
      %s29 = sphi 0, %s27
      %s30 = sphi 0, %s28
      %s31 = sphi 0, %s29
      %s32 = sphi 0, %s30
      %s44 = sphi 0, %s46
      %s47 = sphi 0, %s44
      %s48 = sphi 0, %s47
      %s64 = sphi 0, %s48
      %s70 = sphi 0, %s72
      %s73 = sphi 0, %s70
      %s74 = sphi 0, %s73
      %s90 = sphi 0, %s74
      %s96 = sphi 0, %s98
      %s99 = sphi 0, %s96
      %s100 = sphi 0, %s99
      %s116 = sphi 0, %s100
      %s122 = sphi 0, %s124
      %s125 = sphi 0, %s122
      %s126 = sphi 0, %s125
      %s142 = sphi 0, %s126
      %s146 = sphi 0, %s146
      %s148 = sphi 0, %s146
      %s149 = sphi 0, %s148
      %s163 = sphi 0, %s149
      %s167 = sphi 0, %s167
      %s169 = sphi 0, %s167
      %s170 = sphi 0, %s169
      %s184 = sphi 0, %s170
      %s188 = sphi 0, %s188
      %s190 = sphi 0, %s188
      %s191 = sphi 0, %s190
      %s205 = sphi 0, %s191
      %s211 = sphi 0, %s213
      %s214 = sphi 0, %s211
      %s215 = sphi 0, %s214
      %s231 = sphi 0, %s215
    $region4: #{tpu_custom_call.1} parent=1 // loop_header_branch
      %23 = sbr.rel (%p21) target = $region8
    $region5: #{tpu_custom_call.1} parent=1 // loop_body
      %s25 = ssub.s32 %s20, 1
      %s26 = ssub.s32 %s20, 2
      %s33 = sadd.s32 1, %s28
      %p34 = scmp.ge.s32.totalorder %s33, 2
      %s35 = scalar_select %p34, 0, %s33
      %s36 = sadd.s32 1, %s27
      %s37 = scalar_select %p34, %s36, %s27
      %p38 = scmp.ge.s32.totalorder %s37, 4
      %s39 = scalar_select %p38, 0, %s37
      %s40 = ssub.s32 %s27, %s39
      %s41 = ssub.s32 %s28, %s35
      %s42 = sor.u32 %s40, %s41
      %p43 = scmp.eq.s32.totalorder %s42, 0
      %s45 = sadd.s32 %s44, 1
      %s46 = scalar_select %p43, %s44, %s45
      %p49 = pneg %p43
      %p50 = scmp.eq.s32.totalorder %s20, 7
      %p51 = por %p49, %p50
      %p52 = scmp.ne.s32.totalorder %s44, %s47
      %p53 = scmp.eq.s32.totalorder %s20, 0
      %p54 = por %p52, %p53
      %p55 = scmp.ne.s32.totalorder %s44, %s47
      %p56 = scmp.eq.s32.totalorder %s25, 7
      %p57 = por %p55, %p56
      %p58 = scmp.ne.s32.totalorder %s47, %s48
      %p59 = scmp.eq.s32.totalorder %s25, 0
      %p60 = por %p58, %p59
      %p61 = scmp.ne.s32.totalorder %s47, %s48
      %p62 = scmp.eq.s32.totalorder %s26, 7
      %p63 = por %p61, %p62
      %p65 = scmp.ne.s32.totalorder %s48, %s64
      %p66 = scmp.eq.s32.totalorder %s26, 0
      %p67 = por %p65, %p66
      %s68 = ssub.s32 %s28, %s35
      %p69 = scmp.eq.s32.totalorder %s68, 0
      %s71 = sadd.s32 %s70, 1
      %s72 = scalar_select %p69, %s70, %s71
      %p75 = pneg %p69
      %p76 = scmp.eq.s32.totalorder %s20, 7
      %p77 = por %p75, %p76
      %p78 = scmp.ne.s32.totalorder %s70, %s73
      %p79 = scmp.eq.s32.totalorder %s20, 0
      %p80 = por %p78, %p79
      %p81 = scmp.ne.s32.totalorder %s70, %s73
      %p82 = scmp.eq.s32.totalorder %s25, 7
      %p83 = por %p81, %p82
      %p84 = scmp.ne.s32.totalorder %s73, %s74
      %p85 = scmp.eq.s32.totalorder %s25, 0
      %p86 = por %p84, %p85
      %p87 = scmp.ne.s32.totalorder %s73, %s74
      %p88 = scmp.eq.s32.totalorder %s26, 7
      %p89 = por %p87, %p88
      %p91 = scmp.ne.s32.totalorder %s74, %s90
      %p92 = scmp.eq.s32.totalorder %s26, 0
      %p93 = por %p91, %p92
      %s94 = ssub.s32 %s27, %s39
      %p95 = scmp.eq.s32.totalorder %s94, 0
      %s97 = sadd.s32 %s96, 1
      %s98 = scalar_select %p95, %s96, %s97
      %p101 = pneg %p95
      %p102 = scmp.eq.s32.totalorder %s20, 7
      %p103 = por %p101, %p102
      %p104 = scmp.ne.s32.totalorder %s96, %s99
      %p105 = scmp.eq.s32.totalorder %s20, 0
      %p106 = por %p104, %p105
      %p107 = scmp.ne.s32.totalorder %s96, %s99
      %p108 = scmp.eq.s32.totalorder %s25, 7
      %p109 = por %p107, %p108
      %p110 = scmp.ne.s32.totalorder %s99, %s100
      %p111 = scmp.eq.s32.totalorder %s25, 0
      %p112 = por %p110, %p111
      %p113 = scmp.ne.s32.totalorder %s99, %s100
      %p114 = scmp.eq.s32.totalorder %s26, 7
      %p115 = por %p113, %p114
      %p117 = scmp.ne.s32.totalorder %s100, %s116
      %p118 = scmp.eq.s32.totalorder %s26, 0
      %p119 = por %p117, %p118
      %s120 = ssub.s32 %s27, %s39
      %p121 = scmp.eq.s32.totalorder %s120, 0
      %s123 = sadd.s32 %s122, 1
      %s124 = scalar_select %p121, %s122, %s123
      %p127 = pneg %p121
      %p128 = scmp.eq.s32.totalorder %s20, 7
      %p129 = por %p127, %p128
      %p130 = scmp.ne.s32.totalorder %s122, %s125
      %p131 = scmp.eq.s32.totalorder %s20, 0
      %p132 = por %p130, %p131
      %p133 = scmp.ne.s32.totalorder %s122, %s125
      %p134 = scmp.eq.s32.totalorder %s25, 7
      %p135 = por %p133, %p134
      %p136 = scmp.ne.s32.totalorder %s125, %s126
      %p137 = scmp.eq.s32.totalorder %s25, 0
      %p138 = por %p136, %p137
      %p139 = scmp.ne.s32.totalorder %s125, %s126
      %p140 = scmp.eq.s32.totalorder %s26, 7
      %p141 = por %p139, %p140
      %p143 = scmp.ne.s32.totalorder %s126, %s142
      %p144 = scmp.eq.s32.totalorder %s26, 0
      %p145 = por %p143, %p144
      %s147 = sadd.s32 %s146, 1
      %p150 = scmp.eq.s32.totalorder %s20, 7
      %p151 = scmp.ne.s32.totalorder %s146, %s148
      %p152 = scmp.eq.s32.totalorder %s20, 0
      %p153 = por %p151, %p152
      %p154 = scmp.ne.s32.totalorder %s146, %s148
      %p155 = scmp.eq.s32.totalorder %s25, 7
      %p156 = por %p154, %p155
      %p157 = scmp.ne.s32.totalorder %s148, %s149
      %p158 = scmp.eq.s32.totalorder %s25, 0
      %p159 = por %p157, %p158
      %p160 = scmp.ne.s32.totalorder %s148, %s149
      %p161 = scmp.eq.s32.totalorder %s26, 7
      %p162 = por %p160, %p161
      %p164 = scmp.ne.s32.totalorder %s149, %s163
      %p165 = scmp.eq.s32.totalorder %s26, 0
      %p166 = por %p164, %p165
      %s168 = sadd.s32 %s167, 1
      %p171 = scmp.eq.s32.totalorder %s20, 7
      %p172 = scmp.ne.s32.totalorder %s167, %s169
      %p173 = scmp.eq.s32.totalorder %s20, 0
      %p174 = por %p172, %p173
      %p175 = scmp.ne.s32.totalorder %s167, %s169
      %p176 = scmp.eq.s32.totalorder %s25, 7
      %p177 = por %p175, %p176
      %p178 = scmp.ne.s32.totalorder %s169, %s170
      %p179 = scmp.eq.s32.totalorder %s25, 0
      %p180 = por %p178, %p179
      %p181 = scmp.ne.s32.totalorder %s169, %s170
      %p182 = scmp.eq.s32.totalorder %s26, 7
      %p183 = por %p181, %p182
      %p185 = scmp.ne.s32.totalorder %s170, %s184
      %p186 = scmp.eq.s32.totalorder %s26, 0
      %p187 = por %p185, %p186
      %s189 = sadd.s32 %s188, 1
      %p192 = scmp.eq.s32.totalorder %s20, 7
      %p193 = scmp.ne.s32.totalorder %s188, %s190
      %p194 = scmp.eq.s32.totalorder %s20, 0
      %p195 = por %p193, %p194
      %p196 = scmp.ne.s32.totalorder %s188, %s190
      %p197 = scmp.eq.s32.totalorder %s25, 7
      %p198 = por %p196, %p197
      %p199 = scmp.ne.s32.totalorder %s190, %s191
      %p200 = scmp.eq.s32.totalorder %s25, 0
      %p201 = por %p199, %p200
      %p202 = scmp.ne.s32.totalorder %s190, %s191
      %p203 = scmp.eq.s32.totalorder %s26, 7
      %p204 = por %p202, %p203
      %p206 = scmp.ne.s32.totalorder %s191, %s205
      %p207 = scmp.eq.s32.totalorder %s26, 0
      %p208 = por %p206, %p207
      %s209 = ssub.s32 %s27, %s39
      %p210 = scmp.eq.s32.totalorder %s209, 0
      %s212 = sadd.s32 %s211, 1
      %s213 = scalar_select %p210, %s211, %s212
      %p216 = pneg %p210
      %p217 = scmp.eq.s32.totalorder %s20, 7
      %p218 = por %p216, %p217
      %p219 = scmp.ne.s32.totalorder %s211, %s214
      %p220 = scmp.eq.s32.totalorder %s20, 0
      %p221 = por %p219, %p220
      %p222 = scmp.ne.s32.totalorder %s211, %s214
      %p223 = scmp.eq.s32.totalorder %s25, 7
      %p224 = por %p222, %p223
      %p225 = scmp.ne.s32.totalorder %s214, %s215
      %p226 = scmp.eq.s32.totalorder %s25, 0
      %p227 = por %p225, %p226
      %p228 = scmp.ne.s32.totalorder %s214, %s215
      %p229 = scmp.eq.s32.totalorder %s26, 7
      %p230 = por %p228, %p229
      %p232 = scmp.ne.s32.totalorder %s215, %s231
      %p233 = scmp.eq.s32.totalorder %s26, 0
      %p234 = por %p232, %p233
      %p235 = scmp.le.s32.totalorder 1, %s20
      %p236 = scmp.lt.s32.totalorder %s20, 9
      %p237 = pnand %p235, %p236
      %p238 = pneg %p237
      // Predicated region
      $region9: #{tpu_custom_call.1} parent=5 // pred_check
        _
      $region10: #{tpu_custom_call.1} parent=5 // pred_check_branch
        %240 = sbr.rel (%p237) target = $region12
      $region11: #{tpu_custom_call.1} parent=5 // pred_region
        %s241 = ssub.s32 %s20, 1
        // Predicated region
        $region13: #{tpu_custom_call.1} parent=11 // pred_check
          %p242 = pneg %p159
        $region14: #{tpu_custom_call.1} parent=11 // pred_check_branch
          %244 = sbr.rel (%p242) target = $region16
        $region15: #{tpu_custom_call.1} parent=11 // pred_region
          %246 = vsyncadd [#allocation7], 0
          %s247 = sshll.u32 %s4, 4
          %s248 = int_to_ptr.hbm [resolvable:$true] %s247
          %s249 = sshll.u32 [#allocation6], 4
          %s250 = int_to_ptr.vmem [resolvable:$true] %s249
          %255 = dma.hbm_to_vmem [thread:$0]  %s248, 1024, %s250, [#allocation7], 64, 64, 4
        $region16: #{tpu_custom_call.1} parent=11 // pred_fallthru
          _
        // Predicated region
        $region17: #{tpu_custom_call.1} parent=11 // pred_check
          %p256 = pneg %p180
        $region18: #{tpu_custom_call.1} parent=11 // pred_check_branch
          %258 = sbr.rel (%p256) target = $region20
        $region19: #{tpu_custom_call.1} parent=11 // pred_region
          %260 = vsyncadd [#allocation7], 0
          %s261 = sshll.u32 %s5, 4
          %s262 = int_to_ptr.hbm [resolvable:$true] %s261
          %s263 = sshll.u32 [#allocation8], 4
          %s264 = int_to_ptr.vmem [resolvable:$true] %s263
          %269 = dma.hbm_to_vmem [thread:$0]  %s262, 1024, %s264, [#allocation7], 64, 64, 4
        $region20: #{tpu_custom_call.1} parent=11 // pred_fallthru
          _
        // Predicated region
        $region21: #{tpu_custom_call.1} parent=11 // pred_check
          %p270 = pneg %p201
        $region22: #{tpu_custom_call.1} parent=11 // pred_check_branch
          %272 = sbr.rel (%p270) target = $region24
        $region23: #{tpu_custom_call.1} parent=11 // pred_region
          _
        $region24: #{tpu_custom_call.1} parent=11 // pred_fallthru
          _
      $region12: #{tpu_custom_call.1} parent=5 // pred_fallthru
        _
      %p273 = scmp.lt.s32.totalorder %s20, 8
      // Predicated region
      $region25: #{tpu_custom_call.1} parent=5 // pred_check
        %p274 = pneg %p273
      $region26: #{tpu_custom_call.1} parent=5 // pred_check_branch
        %276 = sbr.rel (%p274) target = $region28
      $region27: #{tpu_custom_call.1} parent=5 // pred_region
        // Predicated region
        $region29: #{tpu_custom_call.1} parent=27 // pred_check
          %p277 = pneg %p54
        $region30: #{tpu_custom_call.1} parent=27 // pred_check_branch
          %279 = sbr.rel (%p277) target = $region32
        $region31: #{tpu_custom_call.1} parent=27 // pred_region
          %s280 = sand.u32 %s44, 1
          %s281 = scalar_lea.sflag [#allocation4], %s280
          %s282 = sand.u32 %s44, 1
          %s283 = smul.addr %s282, 128
          %s284 = scalar_lea.vmem [#allocation3], %s283
          %s285 = smul.u32 16, %s27
          %s286 = smul.u32 2, %s28
          %288 = vsyncadd %s281, 0
          %s289 = smul.addr %s285, 4
          %s290 = sadd.s32 %s286, %s289
          %s291 = smul.addr %s290, 4
          %s292 = scalar_lea.hbm %s0, %s291
          %s293 = sshll.u32 %s292, 4
          %s294 = int_to_ptr.hbm [resolvable:$true] %s293
          %s295 = sshll.u32 %s284, 4
          %s296 = int_to_ptr.vmem [resolvable:$true] %s295
          %301 = dma.hbm_to_vmem [thread:$0]  %s294, 2048, %s296, %s281, 256, 128, 8
        $region32: #{tpu_custom_call.1} parent=27 // pred_fallthru
          _
        // Predicated region
        $region33: #{tpu_custom_call.1} parent=27 // pred_check
          %p302 = pneg %p80
        $region34: #{tpu_custom_call.1} parent=27 // pred_check_branch
          %304 = sbr.rel (%p302) target = $region36
        $region35: #{tpu_custom_call.1} parent=27 // pred_region
          %s305 = smul.u32 32, %s28
          %p306 = scmp.lt.s32.totalorder %s305, 63
          %s307 = scalar_select %p306, %s305, 63
          %s308 = smul.addr %s307, 4
          %s309 = scalar_lea.vmem %s1, %s308
          %s310 = smul.u32 32, %s28
        $region36: #{tpu_custom_call.1} parent=27 // pred_fallthru
          _
        // Predicated region
        $region37: #{tpu_custom_call.1} parent=27 // pred_check
          %p311 = pneg %p106
        $region38: #{tpu_custom_call.1} parent=27 // pred_check_branch
          %313 = sbr.rel (%p311) target = $region40
        $region39: #{tpu_custom_call.1} parent=27 // pred_region
          %s314 = smul.u32 16, %s27
          %p315 = scmp.lt.s32.totalorder %s314, 63
          %s316 = scalar_select %p315, %s314, 63
          %s317 = smul.addr %s316, 4
          %s318 = scalar_lea.vmem %s2, %s317
          %s319 = smul.u32 16, %s27
        $region40: #{tpu_custom_call.1} parent=27 // pred_fallthru
          _
        // Predicated region
        $region41: #{tpu_custom_call.1} parent=27 // pred_check
          %p320 = pneg %p132
        $region42: #{tpu_custom_call.1} parent=27 // pred_check_branch
          %322 = sbr.rel (%p320) target = $region44
        $region43: #{tpu_custom_call.1} parent=27 // pred_region
          %s323 = smul.u32 16, %s27
          %p324 = scmp.lt.s32.totalorder %s323, 63
          %s325 = scalar_select %p324, %s323, 63
          %s326 = smul.addr %s325, 8
          %s327 = scalar_lea.vmem %s3, %s326
          %s328 = smul.u32 16, %s27
        $region44: #{tpu_custom_call.1} parent=27 // pred_fallthru
          _
      $region28: #{tpu_custom_call.1} parent=5 // pred_fallthru
        _
      %p329 = scmp.le.s32.totalorder 1, %s20
      %p330 = scmp.lt.s32.totalorder %s20, 9
      %p331 = pnand %p329, %p330
      %p332 = pneg %p331
      // Predicated region
      $region45: #{tpu_custom_call.1} parent=5 // pred_check
        _
      $region46: #{tpu_custom_call.1} parent=5 // pred_check_branch
        %334 = sbr.rel (%p331) target = $region48
      $region47: #{tpu_custom_call.1} parent=5 // pred_region
        %s335 = ssub.s32 %s20, 1
        %s336 = sand.u32 %s47, 1
        %s337 = scalar_lea.sflag [#allocation4], %s336
        %s338 = sand.u32 %s47, 1
        %s339 = smul.addr %s338, 128
        %s340 = scalar_lea.vmem [#allocation3], %s339
        // Predicated region
        $region49: #{tpu_custom_call.1} parent=47 // pred_check
          %p341 = pneg %p60
        $region50: #{tpu_custom_call.1} parent=47 // pred_check_branch
          %343 = sbr.rel (%p341) target = $region52
        $region51: #{tpu_custom_call.1} parent=47 // pred_region
          %345 = dma.done %s337, 2048
        $region52: #{tpu_custom_call.1} parent=47 // pred_fallthru
          _
        // Predicated region
        $region53: #{tpu_custom_call.1} parent=47 // pred_check
          %p346 = pneg %p159
        $region54: #{tpu_custom_call.1} parent=47 // pred_check_branch
          %348 = sbr.rel (%p346) target = $region56
        $region55: #{tpu_custom_call.1} parent=47 // pred_region
          %350 = dma.done [#allocation7], 1024
        $region56: #{tpu_custom_call.1} parent=47 // pred_fallthru
          _
        // Predicated region
        $region57: #{tpu_custom_call.1} parent=47 // pred_check
          %p351 = pneg %p180
        $region58: #{tpu_custom_call.1} parent=47 // pred_check_branch
          %353 = sbr.rel (%p351) target = $region60
        $region59: #{tpu_custom_call.1} parent=47 // pred_region
          %355 = dma.done [#allocation7], 1024
        $region60: #{tpu_custom_call.1} parent=47 // pred_fallthru
          _
        %s356 = sand.u32 %s47, 1
        %s357 = scalar_lea.sflag [#allocation4], %s356
        %s358 = sand.u32 %s47, 1
        %s359 = smul.addr %s358, 128
        %s360 = scalar_lea.vmem [#allocation3], %s359
        %p361 = pneg %p60
        %p362 = pneg %p57
        %s363 = smul.u32 32, %s30
        %p364 = scmp.lt.s32.totalorder %s363, 63
        %s365 = scalar_select %p364, %s363, 63
        %s366 = smul.addr %s365, 4
        %s367 = scalar_lea.vmem %s1, %s366
        %p368 = pneg %p86
        %p369 = pneg %p83
        %s370 = smul.u32 16, %s29
        %p371 = scmp.lt.s32.totalorder %s370, 63
        %s372 = scalar_select %p371, %s370, 63
        %s373 = smul.addr %s372, 4
        %s374 = scalar_lea.vmem %s2, %s373
        %p375 = pneg %p112
        %p376 = pneg %p109
        %s377 = smul.u32 16, %s29
        %p378 = scmp.lt.s32.totalorder %s377, 63
        %s379 = scalar_select %p378, %s377, 63
        %s380 = smul.addr %s379, 8
        %s381 = scalar_lea.vmem %s3, %s380
        %p382 = pneg %p138
        %p383 = pneg %p135
        %p384 = pneg %p159
        %p385 = pneg %p156
        %p386 = pneg %p180
        %p387 = pneg %p177
        %p388 = pneg %p201
        %p389 = pneg %p198
        %p390 = pneg %p227
        %p391 = pneg %p224
        %s392 = sand.u32 %s214, 1
        %s393 = scalar_lea.sflag [#allocation5], %s392
        %s394 = sand.u32 %s214, 1
        %s395 = smul.addr %s394, 128
        %s396 = scalar_lea.vmem [#allocation9], %s395
        %s397 = smul.u32 16, %s29
        %s398 = smul.u32 2, %s30
        %s399 = smul.u32 32, %s30
        %p400 = scmp.lt.s32.totalorder %s399, 63
        %s401 = scalar_select %p400, %s399, 63
        %s402 = smul.addr %s401, 4
        %s403 = scalar_lea.vmem %s1, %s402
        %s404 = smul.u32 32, %s30
        %s405 = smul.u32 16, %s29
        %p406 = scmp.lt.s32.totalorder %s405, 63
        %s407 = scalar_select %p406, %s405, 63
        %s408 = smul.addr %s407, 4
        %s409 = scalar_lea.vmem %s2, %s408
        %s410 = smul.u32 16, %s29
        %s411 = smul.u32 16, %s29
        %p412 = scmp.lt.s32.totalorder %s411, 63
        %s413 = scalar_select %p412, %s411, 63
        %s414 = smul.addr %s413, 8
        %s415 = scalar_lea.vmem %s3, %s414
        %s416 = smul.u32 16, %s29
        %s417 = smul.u32 16, %s29
        %p418 = scmp.eq.s32.totalorder %s30, 0
        // Predicated region
        $region61: #{tpu_custom_call.1} parent=47 // pred_check
          %p419 = pneg %p418
        $region62: #{tpu_custom_call.1} parent=47 // pred_check_branch
          %421 = sbr.rel (%p419) target = $region64
        $region63: #{tpu_custom_call.1} parent=47 // pred_region
          %422 = vst [vmem:[#allocation2] sm:$0xff] 0.0
          %423 = vst [vmem:[#allocation2 + $0x8] sm:$0xff] 0.0
          %424 = vst [vmem:[#allocation2 + $0x10] sm:$0xff] 0.0
          %425 = vst [vmem:[#allocation2 + $0x18] sm:$0xff] 0.0
          %426 = vst [vmem:[#allocation2 + $0x20] sm:$0xff] 0.0
          %427 = vst [vmem:[#allocation2 + $0x28] sm:$0xff] 0.0
          %428 = vst [vmem:[#allocation2 + $0x30] sm:$0xff] 0.0
          %429 = vst [vmem:[#allocation2 + $0x38] sm:$0xff] 0.0
          %430 = vst [vmem:[#allocation2 + $0x40] sm:$0xff] 0.0
          %431 = vst [vmem:[#allocation2 + $0x48] sm:$0xff] 0.0
          %432 = vst [vmem:[#allocation2 + $0x50] sm:$0xff] 0.0
          %433 = vst [vmem:[#allocation2 + $0x58] sm:$0xff] 0.0
          %434 = vst [vmem:[#allocation2 + $0x60] sm:$0xff] 0.0
          %435 = vst [vmem:[#allocation2 + $0x68] sm:$0xff] 0.0
          %436 = vst [vmem:[#allocation2 + $0x70] sm:$0xff] 0.0
          %437 = vst [vmem:[#allocation2 + $0x78] sm:$0xff] 0.0
        $region64: #{tpu_custom_call.1} parent=47 // pred_fallthru
          _
        %v438 = vld [vmem:[#allocation2] sm:$0xff]
        %v439 = vld [vmem:[#allocation2 + $0x8] sm:$0xff]
        %v440 = vld [vmem:[#allocation2 + $0x10] sm:$0xff]
        %v441 = vld [vmem:[#allocation2 + $0x18] sm:$0xff]
        %v442 = vld [vmem:[#allocation2 + $0x20] sm:$0xff]
        %v443 = vld [vmem:[#allocation2 + $0x28] sm:$0xff]
        %v444 = vld [vmem:[#allocation2 + $0x30] sm:$0xff]
        %v445 = vld [vmem:[#allocation2 + $0x38] sm:$0xff]
        %v446 = vld [vmem:[#allocation2 + $0x40] sm:$0xff]
        %v447 = vld [vmem:[#allocation2 + $0x48] sm:$0xff]
        %v448 = vld [vmem:[#allocation2 + $0x50] sm:$0xff]
        %v449 = vld [vmem:[#allocation2 + $0x58] sm:$0xff]
        %v450 = vld [vmem:[#allocation2 + $0x60] sm:$0xff]
        %v451 = vld [vmem:[#allocation2 + $0x68] sm:$0xff]
        %v452 = vld [vmem:[#allocation2 + $0x70] sm:$0xff]
        %v453 = vld [vmem:[#allocation2 + $0x78] sm:$0xff]
        %v454 = vld [vmem:[%s340] sm:$0xff]
        %v455 = vld [vmem:[%s340 + $0x8] sm:$0xff]
        %v456 = vld [vmem:[%s340 + $0x10] sm:$0xff]
        %v457 = vld [vmem:[%s340 + $0x18] sm:$0xff]
        %v458 = vld [vmem:[%s340 + $0x20] sm:$0xff]
        %v459 = vld [vmem:[%s340 + $0x28] sm:$0xff]
        %v460 = vld [vmem:[%s340 + $0x30] sm:$0xff]
        %v461 = vld [vmem:[%s340 + $0x38] sm:$0xff]
        %v462 = vld [vmem:[%s340 + $0x40] sm:$0xff]
        %v463 = vld [vmem:[%s340 + $0x48] sm:$0xff]
        %v464 = vld [vmem:[%s340 + $0x50] sm:$0xff]
        %v465 = vld [vmem:[%s340 + $0x58] sm:$0xff]
        %v466 = vld [vmem:[%s340 + $0x60] sm:$0xff]
        %v467 = vld [vmem:[%s340 + $0x68] sm:$0xff]
        %v468 = vld [vmem:[%s340 + $0x70] sm:$0xff]
        %v469 = vld [vmem:[%s340 + $0x78] sm:$0xff]
        %v470 = vld [vmem:[%s403] sm:$0xf]
        %v471 = vld [vmem:[%s403 + $0x4] sm:$0xf]
        %v472 = vld [vmem:[%s403 + $0x8] sm:$0xf]
        %v473 = vld [vmem:[%s403 + $0xc] sm:$0xf]
        %v474 = vld [vmem:[%s403 + $0x10] sm:$0xf]
        %v475 = vld [vmem:[%s403 + $0x14] sm:$0xf]
        %v476 = vld [vmem:[%s403 + $0x18] sm:$0xf]
        %v477 = vld [vmem:[%s403 + $0x1c] sm:$0xf]
        %v478 = vld [vmem:[%s403 + $0x20] sm:$0xf]
        %v479 = vld [vmem:[%s403 + $0x24] sm:$0xf]
        %v480 = vld [vmem:[%s403 + $0x28] sm:$0xf]
        %v481 = vld [vmem:[%s403 + $0x2c] sm:$0xf]
        %v482 = vld [vmem:[%s403 + $0x30] sm:$0xf]
        %v483 = vld [vmem:[%s403 + $0x34] sm:$0xf]
        %v484 = vld [vmem:[%s403 + $0x38] sm:$0xf]
        %v485 = vld [vmem:[%s403 + $0x3c] sm:$0xf]
        %v486 = vld [vmem:[%s403 + $0x40] sm:$0xf]
        %v487 = vld [vmem:[%s403 + $0x44] sm:$0xf]
        %v488 = vld [vmem:[%s403 + $0x48] sm:$0xf]
        %v489 = vld [vmem:[%s403 + $0x4c] sm:$0xf]
        %v490 = vld [vmem:[%s403 + $0x50] sm:$0xf]
        %v491 = vld [vmem:[%s403 + $0x54] sm:$0xf]
        %v492 = vld [vmem:[%s403 + $0x58] sm:$0xf]
        %v493 = vld [vmem:[%s403 + $0x5c] sm:$0xf]
        %v494 = vld [vmem:[%s403 + $0x60] sm:$0xf]
        %v495 = vld [vmem:[%s403 + $0x64] sm:$0xf]
        %v496 = vld [vmem:[%s403 + $0x68] sm:$0xf]
        %v497 = vld [vmem:[%s403 + $0x6c] sm:$0xf]
        %v498 = vld [vmem:[%s403 + $0x70] sm:$0xf]
        %v499 = vld [vmem:[%s403 + $0x74] sm:$0xf]
        %v500 = vld [vmem:[%s403 + $0x78] sm:$0xf]
        %v501 = vld [vmem:[%s403 + $0x7c] sm:$0xf]
        %v518 = vunpack.c.l.b16 %v454
        %v519 = vunpack.c.h.b16 %v454
        %v520 = vunpack.c.l.b16 %v455
        %v521 = vunpack.c.h.b16 %v455
        %v522 = vunpack.c.l.b16 %v456
        %v523 = vunpack.c.h.b16 %v456
        %v524 = vunpack.c.l.b16 %v457
        %v525 = vunpack.c.h.b16 %v457
        %v526 = vunpack.c.l.b16 %v458
        %v527 = vunpack.c.h.b16 %v458
        %v528 = vunpack.c.l.b16 %v459
        %v529 = vunpack.c.h.b16 %v459
        %v530 = vunpack.c.l.b16 %v460
        %v531 = vunpack.c.h.b16 %v460
        %v532 = vunpack.c.l.b16 %v461
        %v533 = vunpack.c.h.b16 %v461
        %v534 = vunpack.c.l.b16 %v462
        %v535 = vunpack.c.h.b16 %v462
        %v536 = vunpack.c.l.b16 %v463
        %v537 = vunpack.c.h.b16 %v463
        %v538 = vunpack.c.l.b16 %v464
        %v539 = vunpack.c.h.b16 %v464
        %v540 = vunpack.c.l.b16 %v465
        %v541 = vunpack.c.h.b16 %v465
        %v542 = vunpack.c.l.b16 %v466
        %v543 = vunpack.c.h.b16 %v466
        %v544 = vunpack.c.l.b16 %v467
        %v545 = vunpack.c.h.b16 %v467
        %v546 = vunpack.c.l.b16 %v468
        %v547 = vunpack.c.h.b16 %v468
        %v548 = vunpack.c.l.b16 %v469
        %v549 = vunpack.c.h.b16 %v469
        %v550 = vpack.c.b16 %v520, %v518
        %v551 = vpack.c.b16 %v521, %v519
        %v552 = vpack.c.b16 %v524, %v522
        %v553 = vpack.c.b16 %v525, %v523
        %v554 = vpack.c.b16 %v528, %v526
        %v555 = vpack.c.b16 %v529, %v527
        %v556 = vpack.c.b16 %v532, %v530
        %v557 = vpack.c.b16 %v533, %v531
        %v558 = vpack.c.b16 %v536, %v534
        %v559 = vpack.c.b16 %v537, %v535
        %v560 = vpack.c.b16 %v540, %v538
        %v561 = vpack.c.b16 %v541, %v539
        %v562 = vpack.c.b16 %v544, %v542
        %v563 = vpack.c.b16 %v545, %v543
        %v564 = vpack.c.b16 %v548, %v546
        %v565 = vpack.c.b16 %v549, %v547
        %v614 = vunpack.c.l.b16 %v470
        %v615 = vunpack.c.l.b16 %v471
        %v616 = vunpack.c.l.b16 %v472
        %v617 = vunpack.c.l.b16 %v473
        %v618 = vunpack.c.l.b16 %v474
        %v619 = vunpack.c.l.b16 %v475
        %v620 = vunpack.c.l.b16 %v476
        %v621 = vunpack.c.l.b16 %v477
        %v622 = vunpack.c.l.b16 %v478
        %v623 = vunpack.c.l.b16 %v479
        %v624 = vunpack.c.l.b16 %v480
        %v625 = vunpack.c.l.b16 %v481
        %v626 = vunpack.c.l.b16 %v482
        %v627 = vunpack.c.l.b16 %v483
        %v628 = vunpack.c.l.b16 %v484
        %v629 = vunpack.c.l.b16 %v485
        %v630 = vunpack.c.l.b16 %v486
        %v631 = vunpack.c.l.b16 %v487
        %v632 = vunpack.c.l.b16 %v488
        %v633 = vunpack.c.l.b16 %v489
        %v634 = vunpack.c.l.b16 %v490
        %v635 = vunpack.c.l.b16 %v491
        %v636 = vunpack.c.l.b16 %v492
        %v637 = vunpack.c.l.b16 %v493
        %v638 = vunpack.c.l.b16 %v494
        %v639 = vunpack.c.l.b16 %v495
        %v640 = vunpack.c.l.b16 %v496
        %v641 = vunpack.c.l.b16 %v497
        %v642 = vunpack.c.l.b16 %v498
        %v643 = vunpack.c.l.b16 %v499
        %v644 = vunpack.c.l.b16 %v500
        %v645 = vunpack.c.l.b16 %v501
        %v646 = vpack.c.b16 %v615, %v614
        %v647 = vpack.c.b16 %v617, %v616
        %v648 = vpack.c.b16 %v619, %v618
        %v649 = vpack.c.b16 %v621, %v620
        %v650 = vpack.c.b16 %v623, %v622
        %v651 = vpack.c.b16 %v625, %v624
        %v652 = vpack.c.b16 %v627, %v626
        %v653 = vpack.c.b16 %v629, %v628
        %v654 = vpack.c.b16 %v631, %v630
        %v655 = vpack.c.b16 %v633, %v632
        %v656 = vpack.c.b16 %v635, %v634
        %v657 = vpack.c.b16 %v637, %v636
        %v658 = vpack.c.b16 %v639, %v638
        %v659 = vpack.c.b16 %v641, %v640
        %v660 = vpack.c.b16 %v643, %v642
        %v661 = vpack.c.b16 %v645, %v644
        %678 = vmatpush.bf16.msra.mxu0 %v653
        %679 = vmatpush.bf16.msra.mxu0 %v652
        %680 = vmatpush.bf16.msra.mxu0 %v651
        %681 = vmatpush.bf16.msra.mxu0 %v650
        %682 = vmatpush.bf16.msra.mxu0 %v649
        %683 = vmatpush.bf16.msra.mxu0 %v648
        %684 = vmatpush.bf16.msra.mxu0 %v647
        %685 = vmatpush.bf16.msra.mxu0 %v646
        %686 = vmatmul.bf16.gmra.mxu0 %v550
        %v687 = vpop.f32.mrf.mxu0
        %v688 = vadd.f32 0.0, %v687
        %v689 = vpop.f32.mrf.mxu0
        %v690 = vadd.f32 0.0, %v689
        %691 = vmatmul.bf16.gmra.mxu0 %v552
        %v692 = vpop.f32.mrf.mxu0
        %v693 = vadd.f32 0.0, %v692
        %v694 = vpop.f32.mrf.mxu0
        %v695 = vadd.f32 0.0, %v694
        %696 = vmatmul.bf16.gmra.mxu0 %v554
        %v697 = vpop.f32.mrf.mxu0
        %v698 = vadd.f32 0.0, %v697
        %v699 = vpop.f32.mrf.mxu0
        %v700 = vadd.f32 0.0, %v699
        %701 = vmatmul.bf16.gmra.mxu0 %v556
        %v702 = vpop.f32.mrf.mxu0
        %v703 = vadd.f32 0.0, %v702
        %v704 = vpop.f32.mrf.mxu0
        %v705 = vadd.f32 0.0, %v704
        %706 = vmatmul.bf16.gmra.mxu0 %v558
        %v707 = vpop.f32.mrf.mxu0
        %v708 = vadd.f32 0.0, %v707
        %v709 = vpop.f32.mrf.mxu0
        %v710 = vadd.f32 0.0, %v709
        %711 = vmatmul.bf16.gmra.mxu0 %v560
        %v712 = vpop.f32.mrf.mxu0
        %v713 = vadd.f32 0.0, %v712
        %v714 = vpop.f32.mrf.mxu0
        %v715 = vadd.f32 0.0, %v714
        %716 = vmatmul.bf16.gmra.mxu0 %v562
        %v717 = vpop.f32.mrf.mxu0
        %v718 = vadd.f32 0.0, %v717
        %v719 = vpop.f32.mrf.mxu0
        %v720 = vadd.f32 0.0, %v719
        %721 = vmatmul.bf16.gmra.mxu0 %v564
        %v722 = vpop.f32.mrf.mxu0
        %v723 = vadd.f32 0.0, %v722
        %v724 = vpop.f32.mrf.mxu0
        %v725 = vadd.f32 0.0, %v724
        %726 = vdwg.mxu0
        %727 = vmatpush.bf16.msra.mxu0 %v661
        %728 = vmatpush.bf16.msra.mxu0 %v660
        %729 = vmatpush.bf16.msra.mxu0 %v659
        %730 = vmatpush.bf16.msra.mxu0 %v658
        %731 = vmatpush.bf16.msra.mxu0 %v657
        %732 = vmatpush.bf16.msra.mxu0 %v656
        %733 = vmatpush.bf16.msra.mxu0 %v655
        %734 = vmatpush.bf16.msra.mxu0 %v654
        %735 = vmatmul.bf16.gmra.mxu0 %v551
        %v736 = vpop.f32.mrf.mxu0
        %v737 = vadd.f32 %v688, %v736
        %v738 = vpop.f32.mrf.mxu0
        %v739 = vadd.f32 %v690, %v738
        %740 = vmatmul.bf16.gmra.mxu0 %v553
        %v741 = vpop.f32.mrf.mxu0
        %v742 = vadd.f32 %v693, %v741
        %v743 = vpop.f32.mrf.mxu0
        %v744 = vadd.f32 %v695, %v743
        %745 = vmatmul.bf16.gmra.mxu0 %v555
        %v746 = vpop.f32.mrf.mxu0
        %v747 = vadd.f32 %v698, %v746
        %v748 = vpop.f32.mrf.mxu0
        %v749 = vadd.f32 %v700, %v748
        %750 = vmatmul.bf16.gmra.mxu0 %v557
        %v751 = vpop.f32.mrf.mxu0
        %v752 = vadd.f32 %v703, %v751
        %v753 = vpop.f32.mrf.mxu0
        %v754 = vadd.f32 %v705, %v753
        %755 = vmatmul.bf16.gmra.mxu0 %v559
        %v756 = vpop.f32.mrf.mxu0
        %v757 = vadd.f32 %v708, %v756
        %v758 = vpop.f32.mrf.mxu0
        %v759 = vadd.f32 %v710, %v758
        %760 = vmatmul.bf16.gmra.mxu0 %v561
        %v761 = vpop.f32.mrf.mxu0
        %v762 = vadd.f32 %v713, %v761
        %v763 = vpop.f32.mrf.mxu0
        %v764 = vadd.f32 %v715, %v763
        %765 = vmatmul.bf16.gmra.mxu0 %v563
        %v766 = vpop.f32.mrf.mxu0
        %v767 = vadd.f32 %v718, %v766
        %v768 = vpop.f32.mrf.mxu0
        %v769 = vadd.f32 %v720, %v768
        %770 = vmatmul.bf16.gmra.mxu0 %v565
        %v771 = vpop.f32.mrf.mxu0
        %v772 = vadd.f32 %v723, %v771
        %v773 = vpop.f32.mrf.mxu0
        %v774 = vadd.f32 %v725, %v773
        %775 = vdwg.mxu0
        %v776 = vadd.f32 %v438, %v737
        %v777 = vadd.f32 %v439, %v739
        %v778 = vadd.f32 %v440, %v742
        %v779 = vadd.f32 %v441, %v744
        %v780 = vadd.f32 %v442, %v747
        %v781 = vadd.f32 %v443, %v749
        %v782 = vadd.f32 %v444, %v752
        %v783 = vadd.f32 %v445, %v754
        %v784 = vadd.f32 %v446, %v757
        %v785 = vadd.f32 %v447, %v759
        %v786 = vadd.f32 %v448, %v762
        %v787 = vadd.f32 %v449, %v764
        %v788 = vadd.f32 %v450, %v767
        %v789 = vadd.f32 %v451, %v769
        %v790 = vadd.f32 %v452, %v772
        %v791 = vadd.f32 %v453, %v774
        %792 = vst [vmem:[#allocation2] sm:$0xff] %v776
        %793 = vst [vmem:[#allocation2 + $0x8] sm:$0xff] %v777
        %794 = vst [vmem:[#allocation2 + $0x10] sm:$0xff] %v778
        %795 = vst [vmem:[#allocation2 + $0x18] sm:$0xff] %v779
        %796 = vst [vmem:[#allocation2 + $0x20] sm:$0xff] %v780
        %797 = vst [vmem:[#allocation2 + $0x28] sm:$0xff] %v781
        %798 = vst [vmem:[#allocation2 + $0x30] sm:$0xff] %v782
        %799 = vst [vmem:[#allocation2 + $0x38] sm:$0xff] %v783
        %800 = vst [vmem:[#allocation2 + $0x40] sm:$0xff] %v784
        %801 = vst [vmem:[#allocation2 + $0x48] sm:$0xff] %v785
        %802 = vst [vmem:[#allocation2 + $0x50] sm:$0xff] %v786
        %803 = vst [vmem:[#allocation2 + $0x58] sm:$0xff] %v787
        %804 = vst [vmem:[#allocation2 + $0x60] sm:$0xff] %v788
        %805 = vst [vmem:[#allocation2 + $0x68] sm:$0xff] %v789
        %806 = vst [vmem:[#allocation2 + $0x70] sm:$0xff] %v790
        %807 = vst [vmem:[#allocation2 + $0x78] sm:$0xff] %v791
        %p808 = scmp.eq.s32.totalorder %s30, 1
        // Predicated region
        $region65: #{tpu_custom_call.1} parent=47 // pred_check
          %p809 = pneg %p808
        $region66: #{tpu_custom_call.1} parent=47 // pred_check_branch
          %811 = sbr.rel (%p809) target = $region68
        $region67: #{tpu_custom_call.1} parent=47 // pred_region
          %v812 = vld [vmem:[#allocation2] sm:$0xff]
          %v813 = vld [vmem:[#allocation2 + $0x8] sm:$0xff]
          %v814 = vld [vmem:[#allocation2 + $0x10] sm:$0xff]
          %v815 = vld [vmem:[#allocation2 + $0x18] sm:$0xff]
          %v816 = vld [vmem:[#allocation2 + $0x20] sm:$0xff]
          %v817 = vld [vmem:[#allocation2 + $0x28] sm:$0xff]
          %v818 = vld [vmem:[#allocation2 + $0x30] sm:$0xff]
          %v819 = vld [vmem:[#allocation2 + $0x38] sm:$0xff]
          %v820 = vld [vmem:[#allocation2 + $0x40] sm:$0xff]
          %v821 = vld [vmem:[#allocation2 + $0x48] sm:$0xff]
          %v822 = vld [vmem:[#allocation2 + $0x50] sm:$0xff]
          %v823 = vld [vmem:[#allocation2 + $0x58] sm:$0xff]
          %v824 = vld [vmem:[#allocation2 + $0x60] sm:$0xff]
          %v825 = vld [vmem:[#allocation2 + $0x68] sm:$0xff]
          %v826 = vld [vmem:[#allocation2 + $0x70] sm:$0xff]
          %v827 = vld [vmem:[#allocation2 + $0x78] sm:$0xff]
          %v828 = vld [vmem:[%s415] sm:$0xff]
          %v829 = vld [vmem:[%s415 + $0x8] sm:$0xff]
          %v830 = vld [vmem:[%s415 + $0x10] sm:$0xff]
          %v831 = vld [vmem:[%s415 + $0x18] sm:$0xff]
          %v832 = vld [vmem:[%s415 + $0x20] sm:$0xff]
          %v833 = vld [vmem:[%s415 + $0x28] sm:$0xff]
          %v834 = vld [vmem:[%s415 + $0x30] sm:$0xff]
          %v835 = vld [vmem:[%s415 + $0x38] sm:$0xff]
          %v836 = vld [vmem:[%s415 + $0x40] sm:$0xff]
          %v837 = vld [vmem:[%s415 + $0x48] sm:$0xff]
          %v838 = vld [vmem:[%s415 + $0x50] sm:$0xff]
          %v839 = vld [vmem:[%s415 + $0x58] sm:$0xff]
          %v840 = vld [vmem:[%s415 + $0x60] sm:$0xff]
          %v841 = vld [vmem:[%s415 + $0x68] sm:$0xff]
          %v842 = vld [vmem:[%s415 + $0x70] sm:$0xff]
          %v843 = vld [vmem:[%s415 + $0x78] sm:$0xff]
          %845 = vset.pattern.permute.xlu0 0
          %846 = vperm.xlu0 %845, %v828
          %v847 = vpop.permute.xlu0 %846
          %850 = vset.pattern.permute.xlu0 0
          %851 = vperm.xlu0 %850, %v829
          %v852 = vpop.permute.xlu0 %851
          %855 = vset.pattern.permute.xlu0 0
          %856 = vperm.xlu0 %855, %v830
          %v857 = vpop.permute.xlu0 %856
          %860 = vset.pattern.permute.xlu0 0
          %861 = vperm.xlu0 %860, %v831
          %v862 = vpop.permute.xlu0 %861
          %865 = vset.pattern.permute.xlu0 0
          %866 = vperm.xlu0 %865, %v832
          %v867 = vpop.permute.xlu0 %866
          %870 = vset.pattern.permute.xlu0 0
          %871 = vperm.xlu0 %870, %v833
          %v872 = vpop.permute.xlu0 %871
          %875 = vset.pattern.permute.xlu0 0
          %876 = vperm.xlu0 %875, %v834
          %v877 = vpop.permute.xlu0 %876
          %880 = vset.pattern.permute.xlu0 0
          %881 = vperm.xlu0 %880, %v835
          %v882 = vpop.permute.xlu0 %881
          %885 = vset.pattern.permute.xlu0 0
          %886 = vperm.xlu0 %885, %v836
          %v887 = vpop.permute.xlu0 %886
          %890 = vset.pattern.permute.xlu0 0
          %891 = vperm.xlu0 %890, %v837
          %v892 = vpop.permute.xlu0 %891
          %895 = vset.pattern.permute.xlu0 0
          %896 = vperm.xlu0 %895, %v838
          %v897 = vpop.permute.xlu0 %896
          %900 = vset.pattern.permute.xlu0 0
          %901 = vperm.xlu0 %900, %v839
          %v902 = vpop.permute.xlu0 %901
          %905 = vset.pattern.permute.xlu0 0
          %906 = vperm.xlu0 %905, %v840
          %v907 = vpop.permute.xlu0 %906
          %910 = vset.pattern.permute.xlu0 0
          %911 = vperm.xlu0 %910, %v841
          %v912 = vpop.permute.xlu0 %911
          %915 = vset.pattern.permute.xlu0 0
          %916 = vperm.xlu0 %915, %v842
          %v917 = vpop.permute.xlu0 %916
          %920 = vset.pattern.permute.xlu0 0
          %921 = vperm.xlu0 %920, %v843
          %v922 = vpop.permute.xlu0 %921
          %v924 = vmul.f32 %v812, %v847
          %v925 = vmul.f32 %v813, %v852
          %v926 = vmul.f32 %v814, %v857
          %v927 = vmul.f32 %v815, %v862
          %v928 = vmul.f32 %v816, %v867
          %v929 = vmul.f32 %v817, %v872
          %v930 = vmul.f32 %v818, %v877
          %v931 = vmul.f32 %v819, %v882
          %v932 = vmul.f32 %v820, %v887
          %v933 = vmul.f32 %v821, %v892
          %v934 = vmul.f32 %v822, %v897
          %v935 = vmul.f32 %v823, %v902
          %v936 = vmul.f32 %v824, %v907
          %v937 = vmul.f32 %v825, %v912
          %v938 = vmul.f32 %v826, %v917
          %v939 = vmul.f32 %v827, %v922
          %v940 = vpack.c.bf16 %v925, %v924
          %v941 = vpack.c.bf16 %v927, %v926
          %v942 = vpack.c.bf16 %v929, %v928
          %v943 = vpack.c.bf16 %v931, %v930
          %v944 = vpack.c.bf16 %v933, %v932
          %v945 = vpack.c.bf16 %v935, %v934
          %v946 = vpack.c.bf16 %v937, %v936
          %v947 = vpack.c.bf16 %v939, %v938
          %v948 = vld [vmem:[%s409] sm:$0xf]
          %v949 = vld [vmem:[%s409 + $0x4] sm:$0xf]
          %v950 = vld [vmem:[%s409 + $0x8] sm:$0xf]
          %v951 = vld [vmem:[%s409 + $0xc] sm:$0xf]
          %v952 = vld [vmem:[%s409 + $0x10] sm:$0xf]
          %v953 = vld [vmem:[%s409 + $0x14] sm:$0xf]
          %v954 = vld [vmem:[%s409 + $0x18] sm:$0xf]
          %v955 = vld [vmem:[%s409 + $0x1c] sm:$0xf]
          %v956 = vld [vmem:[%s409 + $0x20] sm:$0xf]
          %v957 = vld [vmem:[%s409 + $0x24] sm:$0xf]
          %v958 = vld [vmem:[%s409 + $0x28] sm:$0xf]
          %v959 = vld [vmem:[%s409 + $0x2c] sm:$0xf]
          %v960 = vld [vmem:[%s409 + $0x30] sm:$0xf]
          %v961 = vld [vmem:[%s409 + $0x34] sm:$0xf]
          %v962 = vld [vmem:[%s409 + $0x38] sm:$0xf]
          %v963 = vld [vmem:[%s409 + $0x3c] sm:$0xf]
          %v964 = vld [vmem:[#allocation6] sm:$0xf]
          %v965 = vld [vmem:[#allocation6 + $0x4] sm:$0xf]
          %v966 = vld [vmem:[#allocation6 + $0x8] sm:$0xf]
          %v967 = vld [vmem:[#allocation6 + $0xc] sm:$0xf]
          %v968 = vld [vmem:[#allocation6 + $0x10] sm:$0xf]
          %v969 = vld [vmem:[#allocation6 + $0x14] sm:$0xf]
          %v970 = vld [vmem:[#allocation6 + $0x18] sm:$0xf]
          %v971 = vld [vmem:[#allocation6 + $0x1c] sm:$0xf]
          %v972 = vld [vmem:[#allocation6 + $0x20] sm:$0xf]
          %v973 = vld [vmem:[#allocation6 + $0x24] sm:$0xf]
          %v974 = vld [vmem:[#allocation6 + $0x28] sm:$0xf]
          %v975 = vld [vmem:[#allocation6 + $0x2c] sm:$0xf]
          %v976 = vld [vmem:[#allocation6 + $0x30] sm:$0xf]
          %v977 = vld [vmem:[#allocation6 + $0x34] sm:$0xf]
          %v978 = vld [vmem:[#allocation6 + $0x38] sm:$0xf]
          %v979 = vld [vmem:[#allocation6 + $0x3c] sm:$0xf]
          %v980 = vld [vmem:[#allocation8] sm:$0xf]
          %v981 = vld [vmem:[#allocation8 + $0x4] sm:$0xf]
          %v982 = vld [vmem:[#allocation8 + $0x8] sm:$0xf]
          %v983 = vld [vmem:[#allocation8 + $0xc] sm:$0xf]
          %v984 = vld [vmem:[#allocation8 + $0x10] sm:$0xf]
          %v985 = vld [vmem:[#allocation8 + $0x14] sm:$0xf]
          %v986 = vld [vmem:[#allocation8 + $0x18] sm:$0xf]
          %v987 = vld [vmem:[#allocation8 + $0x1c] sm:$0xf]
          %v988 = vld [vmem:[#allocation8 + $0x20] sm:$0xf]
          %v989 = vld [vmem:[#allocation8 + $0x24] sm:$0xf]
          %v990 = vld [vmem:[#allocation8 + $0x28] sm:$0xf]
          %v991 = vld [vmem:[#allocation8 + $0x2c] sm:$0xf]
          %v992 = vld [vmem:[#allocation8 + $0x30] sm:$0xf]
          %v993 = vld [vmem:[#allocation8 + $0x34] sm:$0xf]
          %v994 = vld [vmem:[#allocation8 + $0x38] sm:$0xf]
          %v995 = vld [vmem:[#allocation8 + $0x3c] sm:$0xf]
          %v1012 = vunpack.c.l.b16 %v980
          %v1013 = vunpack.c.l.b16 %v981
          %v1014 = vunpack.c.l.b16 %v982
          %v1015 = vunpack.c.l.b16 %v983
          %v1016 = vunpack.c.l.b16 %v984
          %v1017 = vunpack.c.l.b16 %v985
          %v1018 = vunpack.c.l.b16 %v986
          %v1019 = vunpack.c.l.b16 %v987
          %v1020 = vunpack.c.l.b16 %v988
          %v1021 = vunpack.c.l.b16 %v989
          %v1022 = vunpack.c.l.b16 %v990
          %v1023 = vunpack.c.l.b16 %v991
          %v1024 = vunpack.c.l.b16 %v992
          %v1025 = vunpack.c.l.b16 %v993
          %v1026 = vunpack.c.l.b16 %v994
          %v1027 = vunpack.c.l.b16 %v995
          %v1028 = vpack.c.b16 %v1013, %v1012
          %v1029 = vpack.c.b16 %v1015, %v1014
          %v1030 = vpack.c.b16 %v1017, %v1016
          %v1031 = vpack.c.b16 %v1019, %v1018
          %v1032 = vpack.c.b16 %v1021, %v1020
          %v1033 = vpack.c.b16 %v1023, %v1022
          %v1034 = vpack.c.b16 %v1025, %v1024
          %v1035 = vpack.c.b16 %v1027, %v1026
          %1044 = vmatpush.bf16.msra.mxu0 %v1035
          %1045 = vmatpush.bf16.msra.mxu0 %v1034
          %1046 = vmatpush.bf16.msra.mxu0 %v1033
          %1047 = vmatpush.bf16.msra.mxu0 %v1032
          %1048 = vmatpush.bf16.msra.mxu0 %v1031
          %1049 = vmatpush.bf16.msra.mxu0 %v1030
          %1050 = vmatpush.bf16.msra.mxu0 %v1029
          %1051 = vmatpush.bf16.msra.mxu0 %v1028
          %1052 = vmatmul.bf16.gmra.mxu0 %v940
          %v1053 = vpop.f32.mrf.mxu0
          %v1054 = vadd.f32 0.0, %v1053
          %v1055 = vpop.f32.mrf.mxu0
          %v1056 = vadd.f32 0.0, %v1055
          %1057 = vmatmul.bf16.gmra.mxu0 %v941
          %v1058 = vpop.f32.mrf.mxu0
          %v1059 = vadd.f32 0.0, %v1058
          %v1060 = vpop.f32.mrf.mxu0
          %v1061 = vadd.f32 0.0, %v1060
          %1062 = vmatmul.bf16.gmra.mxu0 %v942
          %v1063 = vpop.f32.mrf.mxu0
          %v1064 = vadd.f32 0.0, %v1063
          %v1065 = vpop.f32.mrf.mxu0
          %v1066 = vadd.f32 0.0, %v1065
          %1067 = vmatmul.bf16.gmra.mxu0 %v943
          %v1068 = vpop.f32.mrf.mxu0
          %v1069 = vadd.f32 0.0, %v1068
          %v1070 = vpop.f32.mrf.mxu0
          %v1071 = vadd.f32 0.0, %v1070
          %1072 = vmatmul.bf16.gmra.mxu0 %v944
          %v1073 = vpop.f32.mrf.mxu0
          %v1074 = vadd.f32 0.0, %v1073
          %v1075 = vpop.f32.mrf.mxu0
          %v1076 = vadd.f32 0.0, %v1075
          %1077 = vmatmul.bf16.gmra.mxu0 %v945
          %v1078 = vpop.f32.mrf.mxu0
          %v1079 = vadd.f32 0.0, %v1078
          %v1080 = vpop.f32.mrf.mxu0
          %v1081 = vadd.f32 0.0, %v1080
          %1082 = vmatmul.bf16.gmra.mxu0 %v946
          %v1083 = vpop.f32.mrf.mxu0
          %v1084 = vadd.f32 0.0, %v1083
          %v1085 = vpop.f32.mrf.mxu0
          %v1086 = vadd.f32 0.0, %v1085
          %1087 = vmatmul.bf16.gmra.mxu0 %v947
          %v1088 = vpop.f32.mrf.mxu0
          %v1089 = vadd.f32 0.0, %v1088
          %v1090 = vpop.f32.mrf.mxu0
          %v1091 = vadd.f32 0.0, %v1090
          %1092 = vdwg.mxu0
          %v1109 = vunpack.c.l.b16 %v948
          %v1110 = vunpack.c.l.b16 %v949
          %v1111 = vunpack.c.l.b16 %v950
          %v1112 = vunpack.c.l.b16 %v951
          %v1113 = vunpack.c.l.b16 %v952
          %v1114 = vunpack.c.l.b16 %v953
          %v1115 = vunpack.c.l.b16 %v954
          %v1116 = vunpack.c.l.b16 %v955
          %v1117 = vunpack.c.l.b16 %v956
          %v1118 = vunpack.c.l.b16 %v957
          %v1119 = vunpack.c.l.b16 %v958
          %v1120 = vunpack.c.l.b16 %v959
          %v1121 = vunpack.c.l.b16 %v960
          %v1122 = vunpack.c.l.b16 %v961
          %v1123 = vunpack.c.l.b16 %v962
          %v1124 = vunpack.c.l.b16 %v963
          %v1125 = vpack.c.b16 %v1110, %v1109
          %v1126 = vpack.c.b16 %v1112, %v1111
          %v1127 = vpack.c.b16 %v1114, %v1113
          %v1128 = vpack.c.b16 %v1116, %v1115
          %v1129 = vpack.c.b16 %v1118, %v1117
          %v1130 = vpack.c.b16 %v1120, %v1119
          %v1131 = vpack.c.b16 %v1122, %v1121
          %v1132 = vpack.c.b16 %v1124, %v1123
          %v1157 = vunpack.c.l.b16 %v964
          %v1158 = vunpack.c.l.b16 %v965
          %v1159 = vunpack.c.l.b16 %v966
          %v1160 = vunpack.c.l.b16 %v967
          %v1161 = vunpack.c.l.b16 %v968
          %v1162 = vunpack.c.l.b16 %v969
          %v1163 = vunpack.c.l.b16 %v970
          %v1164 = vunpack.c.l.b16 %v971
          %v1165 = vunpack.c.l.b16 %v972
          %v1166 = vunpack.c.l.b16 %v973
          %v1167 = vunpack.c.l.b16 %v974
          %v1168 = vunpack.c.l.b16 %v975
          %v1169 = vunpack.c.l.b16 %v976
          %v1170 = vunpack.c.l.b16 %v977
          %v1171 = vunpack.c.l.b16 %v978
          %v1172 = vunpack.c.l.b16 %v979
          %v1173 = vpack.c.b16 %v1158, %v1157
          %v1174 = vpack.c.b16 %v1160, %v1159
          %v1175 = vpack.c.b16 %v1162, %v1161
          %v1176 = vpack.c.b16 %v1164, %v1163
          %v1177 = vpack.c.b16 %v1166, %v1165
          %v1178 = vpack.c.b16 %v1168, %v1167
          %v1179 = vpack.c.b16 %v1170, %v1169
          %v1180 = vpack.c.b16 %v1172, %v1171
          %1189 = vmatpush.bf16.msra.mxu0 %v1180
          %1190 = vmatpush.bf16.msra.mxu0 %v1179
          %1191 = vmatpush.bf16.msra.mxu0 %v1178
          %1192 = vmatpush.bf16.msra.mxu0 %v1177
          %1193 = vmatpush.bf16.msra.mxu0 %v1176
          %1194 = vmatpush.bf16.msra.mxu0 %v1175
          %1195 = vmatpush.bf16.msra.mxu0 %v1174
          %1196 = vmatpush.bf16.msra.mxu0 %v1173
          %1197 = vmatmul.bf16.gmra.mxu0 %v1125
          %v1198 = vpop.f32.mrf.mxu0
          %v1199 = vadd.f32 %v1054, %v1198
          %v1200 = vpop.f32.mrf.mxu0
          %v1201 = vadd.f32 %v1056, %v1200
          %1202 = vmatmul.bf16.gmra.mxu0 %v1126
          %v1203 = vpop.f32.mrf.mxu0
          %v1204 = vadd.f32 %v1059, %v1203
          %v1205 = vpop.f32.mrf.mxu0
          %v1206 = vadd.f32 %v1061, %v1205
          %1207 = vmatmul.bf16.gmra.mxu0 %v1127
          %v1208 = vpop.f32.mrf.mxu0
          %v1209 = vadd.f32 %v1064, %v1208
          %v1210 = vpop.f32.mrf.mxu0
          %v1211 = vadd.f32 %v1066, %v1210
          %1212 = vmatmul.bf16.gmra.mxu0 %v1128
          %v1213 = vpop.f32.mrf.mxu0
          %v1214 = vadd.f32 %v1069, %v1213
          %v1215 = vpop.f32.mrf.mxu0
          %v1216 = vadd.f32 %v1071, %v1215
          %1217 = vmatmul.bf16.gmra.mxu0 %v1129
          %v1218 = vpop.f32.mrf.mxu0
          %v1219 = vadd.f32 %v1074, %v1218
          %v1220 = vpop.f32.mrf.mxu0
          %v1221 = vadd.f32 %v1076, %v1220
          %1222 = vmatmul.bf16.gmra.mxu0 %v1130
          %v1223 = vpop.f32.mrf.mxu0
          %v1224 = vadd.f32 %v1079, %v1223
          %v1225 = vpop.f32.mrf.mxu0
          %v1226 = vadd.f32 %v1081, %v1225
          %1227 = vmatmul.bf16.gmra.mxu0 %v1131
          %v1228 = vpop.f32.mrf.mxu0
          %v1229 = vadd.f32 %v1084, %v1228
          %v1230 = vpop.f32.mrf.mxu0
          %v1231 = vadd.f32 %v1086, %v1230
          %1232 = vmatmul.bf16.gmra.mxu0 %v1132
          %v1233 = vpop.f32.mrf.mxu0
          %v1234 = vadd.f32 %v1089, %v1233
          %v1235 = vpop.f32.mrf.mxu0
          %v1236 = vadd.f32 %v1091, %v1235
          %1237 = vdwg.mxu0
          %v1238 = vld [vmem:[%s6] sm:$0x1]
          %v1240 = vperm.slane %v1238, 0
          %v1242 = vadd.f32 %v1199, %v1240
          %v1243 = vadd.f32 %v1201, %v1240
          %v1244 = vadd.f32 %v1204, %v1240
          %v1245 = vadd.f32 %v1206, %v1240
          %v1246 = vadd.f32 %v1209, %v1240
          %v1247 = vadd.f32 %v1211, %v1240
          %v1248 = vadd.f32 %v1214, %v1240
          %v1249 = vadd.f32 %v1216, %v1240
          %v1250 = vadd.f32 %v1219, %v1240
          %v1251 = vadd.f32 %v1221, %v1240
          %v1252 = vadd.f32 %v1224, %v1240
          %v1253 = vadd.f32 %v1226, %v1240
          %v1254 = vadd.f32 %v1229, %v1240
          %v1255 = vadd.f32 %v1231, %v1240
          %v1256 = vadd.f32 %v1234, %v1240
          %v1257 = vadd.f32 %v1236, %v1240
          %1258 = vst [vmem:[%s396] sm:$0xff] %v1242
          %1259 = vst [vmem:[%s396 + $0x8] sm:$0xff] %v1243
          %1260 = vst [vmem:[%s396 + $0x10] sm:$0xff] %v1244
          %1261 = vst [vmem:[%s396 + $0x18] sm:$0xff] %v1245
          %1262 = vst [vmem:[%s396 + $0x20] sm:$0xff] %v1246
          %1263 = vst [vmem:[%s396 + $0x28] sm:$0xff] %v1247
          %1264 = vst [vmem:[%s396 + $0x30] sm:$0xff] %v1248
          %1265 = vst [vmem:[%s396 + $0x38] sm:$0xff] %v1249
          %1266 = vst [vmem:[%s396 + $0x40] sm:$0xff] %v1250
          %1267 = vst [vmem:[%s396 + $0x48] sm:$0xff] %v1251
          %1268 = vst [vmem:[%s396 + $0x50] sm:$0xff] %v1252
          %1269 = vst [vmem:[%s396 + $0x58] sm:$0xff] %v1253
          %1270 = vst [vmem:[%s396 + $0x60] sm:$0xff] %v1254
          %1271 = vst [vmem:[%s396 + $0x68] sm:$0xff] %v1255
          %1272 = vst [vmem:[%s396 + $0x70] sm:$0xff] %v1256
          %1273 = vst [vmem:[%s396 + $0x78] sm:$0xff] %v1257
        $region68: #{tpu_custom_call.1} parent=47 // pred_fallthru
          _
        %s1274 = sand.u32 %s214, 1
        %s1275 = scalar_lea.sflag [#allocation5], %s1274
        %s1276 = sand.u32 %s214, 1
        %s1277 = smul.addr %s1276, 128
        %s1278 = scalar_lea.vmem [#allocation9], %s1277
        // Predicated region
        $region69: #{tpu_custom_call.1} parent=47 // pred_check
          %p1279 = pneg %p224
        $region70: #{tpu_custom_call.1} parent=47 // pred_check_branch
          %1281 = sbr.rel (%p1279) target = $region72
        $region71: #{tpu_custom_call.1} parent=47 // pred_region
          %s1282 = smul.u32 16, %s29
          %1284 = vsyncadd %s1275, 0
          %s1285 = smul.addr %s1282, 8
          %s1286 = scalar_lea.hbm %s7, %s1285
          %s1287 = sshll.u32 %s1278, 4
          %s1288 = int_to_ptr.vmem [resolvable:$true] %s1287
          %s1289 = sshll.u32 %s1286, 4
          %s1290 = int_to_ptr.hbm [resolvable:$true] %s1289
          %1295 = dma.vmem_to_hbm [thread:$0]  %s1288, 2048, %s1290, %s1275, 128, 128, 8
        $region72: #{tpu_custom_call.1} parent=47 // pred_fallthru
          _
      $region48: #{tpu_custom_call.1} parent=5 // pred_fallthru
        _
      %p1296 = scmp.le.s32.totalorder 2, %s20
      // Predicated region
      $region73: #{tpu_custom_call.1} parent=5 // pred_check
        %p1297 = pneg %p1296
      $region74: #{tpu_custom_call.1} parent=5 // pred_check_branch
        %1299 = sbr.rel (%p1297) target = $region76
      $region75: #{tpu_custom_call.1} parent=5 // pred_region
        %s1300 = ssub.s32 %s20, 2
        // Predicated region
        $region77: #{tpu_custom_call.1} parent=75 // pred_check
          %p1301 = pneg %p230
        $region78: #{tpu_custom_call.1} parent=75 // pred_check_branch
          %1303 = sbr.rel (%p1301) target = $region80
        $region79: #{tpu_custom_call.1} parent=75 // pred_region
          %s1304 = sand.u32 %s215, 1
          %s1305 = scalar_lea.sflag [#allocation5], %s1304
          %s1306 = sand.u32 %s215, 1
          %s1307 = smul.addr %s1306, 128
          %s1308 = scalar_lea.vmem [#allocation9], %s1307
          %1310 = dma.done %s1305, 2048
        $region80: #{tpu_custom_call.1} parent=75 // pred_fallthru
          _
      $region76: #{tpu_custom_call.1} parent=5 // pred_fallthru
        _
    $region6: #{tpu_custom_call.1} parent=1 // loop_footer
      %s24 = sadd.s32 1, %s20
    $region7: #{tpu_custom_call.1} parent=1 // loop_footer_branch
      %19 = sbr.rel target = $region3
    $region8: #{tpu_custom_call.1} parent=1 // loop_exit
      _
    %1311 = vsyncpa [#allocation4], 1
    %s1312 = scalar_lea.sflag [#allocation4], 1
    %1313 = vsyncpa %s1312, 1
    %1314 = vsyncpa [#allocation7], 1
    %1315 = vsyncpa [#allocation5], 1
    %s1316 = scalar_lea.sflag [#allocation5], 1
    %1317 = vsyncpa %s1316, 1

</llo_original>
